<compile_context>
chip_gen: v7x
topology: tpu7x:2x2x1
jax: 0.10.0
libtpu: 0.0.40
codegen_flags: <defaults>
</compile_context>

<pallas_src>
import math

import jax
import jax.numpy as jnp
from jax.experimental import pallas as pl
from jax.experimental.pallas import tpu as pltpu


def _round_up(x, m):
    return (x + m - 1) // m * m


def _pick_tile(n, candidates):
    for t in candidates:
        if t <= n and n % t == 0:
            return t
    return n  # full extent: always a legal block dim


def _vmem_capacity_bytes():
    try:
        cap = getattr(pltpu.get_tpu_info(), "vmem_capacity_bytes", None)
        if cap:
            return int(cap)
    except Exception:
        pass
    return 64 << 20  # conservative default: v7x per-TensorCore VMEM


# --------------------------------------------------------------------------
# Pre-pass: h[b] = seq[b] @ W, stored bf16 (lane-padded F_out) in HBM.
# --------------------------------------------------------------------------
def linear_kernel(seq_ref, w_ref, h_ref):
    # seq_ref: (1, TMH, F_in) f32   w_ref: (F_in, F_out_p) bf16
    # h_ref  : (1, TMH, F_out_p) bf16
    x = seq_ref[0].astype(jnp.bfloat16)
    h = jnp.dot(x, w_ref[...], preferred_element_type=jnp.float32)
    h_ref[0] = h.astype(h_ref.dtype)


# --------------------------------------------------------------------------
# Main pass: out[b] = PReLU(adj[b] @ h[b] + bias), accumulated in f32
# directly in the resident output block over the contraction axis k.
# --------------------------------------------------------------------------
def gcn_aggregate_kernel(adj_ref, h_ref, bias_ref, alpha_ref, out_ref):
    # adj_ref  : (1, TM, TK)       f32 tile (cast to bf16 post-DMA)
    # h_ref    : (1, TK, F_out_p)  bf16 tile
    # bias_ref : (1, F_out_p)      f32, resident
    # alpha_ref: (1,)              f32 scalar in SMEM
    # out_ref  : (1, TM, F_out_p)  f32, resident over k (acts as accumulator)
    k = pl.program_id(2)
    nk = pl.num_programs(2)

    @pl.when(k == 0)
    def _():
        out_ref[...] = jnp.zeros_like(out_ref)

    a = adj_ref[0].astype(jnp.bfloat16)                       # MXU-friendly
    out_ref[0] += jnp.dot(a, h_ref[0], preferred_element_type=jnp.float32)

    @pl.when(k == nk - 1)
    def _():
        o = out_ref[0] + bias_ref[...]                        # f32 epilogue
        alpha = alpha_ref[0]
        out_ref[0] = jnp.where(o >= 0, o, alpha * o)          # PReLU


def gcn_forward(seq, adj, weight, bias, prelu_alpha, *, tm=None, tk=None):
    """seq: (B, N, F_in), adj: (B, N, N), weight: (F_in, F_out), bias: (F_out,)."""
    B, N, F_in = seq.shape
    F_out = weight.shape[1]
    F_out_p = _round_up(F_out, 128)              # lane-dense stores

    # ---- generation-aware tile caps -------------------------------------
    vmem_cap = _vmem_capacity_bytes()
    if vmem_cap >= (100 << 20):                  # v5e / v6e: 128 MiB VMEM
        tm_cands = (1024, 512, 256, 128, 64, 32, 16)
        tk_cands = (2048, 1024, 512, 256, 128)
    else:                                        # v7x: 64 MiB VMEM
        tm_cands = (512, 256, 128, 64, 32, 16)
        tk_cands = (1024, 512, 256, 128)
    if tm is None:
        tm = _pick_tile(N, tm_cands)
    if tk is None:
        tk = _pick_tile(N, tk_cands)
    assert N % tm == 0 and (tm % 8 == 0 or tm == N), (N, tm)
    assert N % tk == 0 and (tk % 128 == 0 or tk == N), (N, tk)

    # Parameters are tiny: pad/cast them once in the wrapper.
    seq_f = seq.astype(jnp.float32)
    adj_f = adj.astype(jnp.float32)
    w_p = jnp.pad(weight.astype(jnp.bfloat16), ((0, 0), (0, F_out_p - F_out)))
    bias_p = jnp.pad(bias.astype(jnp.float32),
                     (0, F_out_p - F_out)).reshape(1, F_out_p)
    alpha = jnp.reshape(jnp.asarray(prelu_alpha, jnp.float32), (1,))

    # ---- pre-pass: h = seq @ W  (bf16, HBM) ------------------------------
    tmh = _pick_tile(N, (512, 256, 128, 64, 32, 16, 8))
    h = pl.pallas_call(
        linear_kernel,
        out_shape=jax.ShapeDtypeStruct((B, N, F_out_p), jnp.bfloat16),
        grid_spec=pltpu.PrefetchScalarGridSpec(
            num_scalar_prefetch=0,
            grid=(B, N // tmh),
            in_specs=[
                pl.BlockSpec((1, tmh, F_in), lambda b, i: (b, i, 0)),
                pl.BlockSpec((F_in, F_out_p), lambda b, i: (0, 0)),
            ],
            out_specs=pl.BlockSpec((1, tmh, F_out_p), lambda b, i: (b, i, 0)),
        ),
        compiler_params=pltpu.CompilerParams(
            dimension_semantics=("parallel", "parallel")),
        cost_estimate=pl.CostEstimate(
            flops=2 * B * N * F_in * F_out_p,
            transcendentals=0,
            bytes_accessed=(seq_f.size * 4 + w_p.size * 2
                            + B * N * F_out_p * 2)),
    )(seq_f, w_p)

    # ---- main pass: out = PReLU(adj @ h + bias) --------------------------
    # VMEM budget (bytes) for the chosen tiles; raise the scoped limit only
    # when the 32 MiB default would be tight.
    est = (3 * tm * tk * 4            # adj f32, triple-buffered
           + 2 * tk * F_out_p * 2     # h bf16, double-buffered
           + 2 * tm * F_out_p * 4     # out f32, double-buffered
           + F_out_p * 4)             # bias (resident)
    vmem_limit = None
    if est > (24 << 20):
        vmem_limit = min(vmem_cap * 3 // 4, est + (16 << 20))

    cost = pl.CostEstimate(
        flops=2 * B * N * N * F_out_p,
        transcendentals=0,
        bytes_accessed=(adj_f.size * 4
                        + B * (N // tm) * N * F_out_p * 2   # h re-read per row tile
                        + B * N * F_out_p * 4
                        + bias_p.size * 4),
    )

    out = pl.pallas_call(
        gcn_aggregate_kernel,
        out_shape=jax.ShapeDtypeStruct((B, N, F_out_p), jnp.float32),
        grid_spec=pltpu.PrefetchScalarGridSpec(
            num_scalar_prefetch=0,
            grid=(B, N // tm, N // tk),
            in_specs=[
                # adjacency tile: dominant HBM stream, extra-deep buffering
                pl.BlockSpec((1, tm, tk), lambda b, i, k: (b, i, k),
                             pipeline_mode=pl.Buffered(3)),
                # h k-tile
                pl.BlockSpec((1, tk, F_out_p), lambda b, i, k: (b, k, 0)),
                # bias: constant index -> held resident
                pl.BlockSpec((1, F_out_p), lambda b, i, k: (0, 0)),
                # PReLU alpha: scalar parameter in SMEM
                pl.BlockSpec(memory_space=pltpu.MemorySpace.SMEM),
            ],
            out_specs=pl.BlockSpec((1, tm, F_out_p), lambda b, i, k: (b, i, 0)),
        ),
        compiler_params=pltpu.CompilerParams(
            # batch and row-tile axes parallel (megacore / v7x 2-TC friendly);
            # contraction axis k is innermost and arbitrary.
            dimension_semantics=("parallel", "parallel", "arbitrary"),
            vmem_limit_bytes=vmem_limit,
        ),
        cost_estimate=cost,
    )(adj_f, h, bias_p, alpha)

    if F_out_p != F_out:
        out = out[..., :F_out]      # drop lane padding
    if B == 1:                      # torch.squeeze(out, 0)
        out = out[0]
    return out


def xavier_uniform(key, fan_in, fan_out):
    # Matches torch.nn.init.xavier_uniform_ on a (out_ft, in_ft) Linear weight.
    bound = math.sqrt(6.0 / (fan_in + fan_out))
    return jax.random.uniform(key, (fan_in, fan_out), jnp.float32, -bound, bound)


def reference_f32(seq, adj, weight, bias, alpha):
    # Straight f32 transcription of the PyTorch module forward.
    h = jnp.einsum("bnf,fo->bno", seq, weight)
    o = jnp.einsum("bnm,bmo->bno", adj, h) + bias
    o = jnp.where(o >= 0, o, alpha * o)
    return o[0] if o.shape[0] == 1 else o


def reference_matched(seq, adj, weight, bias, alpha):
    # Same math at the kernel's bf16 operand precision (f32 accumulation), so
    # this comparison isolates tiling/accumulation logic from bf16 rounding.
    f32 = jnp.float32
    seq_b = seq.astype(jnp.bfloat16).astype(f32)
    adj_b = adj.astype(jnp.bfloat16).astype(f32)
    w_b = weight.astype(jnp.bfloat16).astype(f32)
    h = jnp.einsum("bnf,fo->bno", seq_b, w_b).astype(jnp.bfloat16).astype(f32)
    o = jnp.einsum("bnm,bmo->bno", adj_b, h) + bias
    o = jnp.where(o >= 0, o, alpha * o)
    return o[0] if o.shape[0] == 1 else o


if __name__ == "__main__":
    prelu_alpha = 0.25  # nn.PReLU() default (single shared parameter)

    # ---- tiny shape: B == 1 squeeze path + F_out -> 128 lane padding -------
    k1, k2, k3 = jax.random.split(jax.random.PRNGKey(0), 3)
    B, N, in_ft, out_ft = 1, 8, 16, 32
    seq = jax.random.normal(k1, (B, N, in_ft), jnp.float32)
    adj = jax.random.uniform(k2, (B, N, N), jnp.float32)
    weight = xavier_uniform(k3, in_ft, out_ft)
    bias = jnp.zeros((out_ft,), jnp.float32)        # bias.data.fill_(0.0)

    out = gcn_forward(seq, adj, weight, bias, prelu_alpha)
    jax.block_until_ready(out)
    assert out.shape == (N, out_ft), out.shape
    ref = reference_f32(seq, adj, weight, bias, prelu_alpha)
    assert jnp.allclose(out, ref, rtol=5e-2, atol=5e-2), (
        float(jnp.max(jnp.abs(out - ref))))

    # ---- medium shape: multi-tile grid exercises the h pre-pass, the f32
    # ---- in-place k-axis accumulation, nonzero bias, and the B=2 path ------
    k4, k5, k6, k7 = jax.random.split(jax.random.PRNGKey(1), 4)
    B, N, in_ft, out_ft = 2, 256, 64, 128
    seq = jax.random.normal(k4, (B, N, in_ft), jnp.float32)
    adj = jax.random.uniform(k5, (B, N, N), jnp.float32)
    weight = xavier_uniform(k6, in_ft, out_ft)
    bias = 0.1 * jax.random.normal(k7, (out_ft,), jnp.float32)

    out = gcn_forward(seq, adj, weight, bias, prelu_alpha, tm=128, tk=128)
    jax.block_until_ready(out)
    assert out.shape == (B, N, out_ft), out.shape
    ref = reference_matched(seq, adj, weight, bias, prelu_alpha)
    assert jnp.allclose(out, ref, rtol=5e-3, atol=5e-3), (
        float(jnp.max(jnp.abs(out - ref))))

    print("KERNEL_OK")
</pallas_src>

<mosaic_0001>
module attributes {stable_mosaic.version = 11 : i64} {
  func.func @linear_kernel(%arg0: i32, %arg1: i32, %arg2: memref<1x8x16xf32, #tpu.memory_space<vmem>>, %arg3: memref<16x128xbf16, #tpu.memory_space<vmem>>, %arg4: memref<1x8x128xbf16, #tpu.memory_space<vmem>>) attributes {dimension_semantics = [#tpu.dimension_semantics<parallel>, #tpu.dimension_semantics<parallel>], iteration_bounds = array<i64: 1, 1>, scalar_prefetch = 0 : i64, scratch_operands = 0 : i64, tpu.core_type = #tpu.core_type<tc>, window_params = [{transform_indices = @transform_0, window_bounds = array<i64: 1, 8, 16>}, {pipeline_mode = #tpu.pipeline_mode<synchronous>, transform_indices = @transform_1, window_bounds = array<i64: 16, 128>}, {transform_indices = @transform_2, window_bounds = array<i64: 1, 8, 128>}]} {
    %c0 = arith.constant 0 : index
    %c0_0 = arith.constant 0 : index
    %c0_1 = arith.constant 0 : index
    %0 = vector.load %arg2[%c0, %c0_0, %c0_1] : memref<1x8x16xf32, #tpu.memory_space<vmem>>, vector<1x8x16xf32>
    %1 = vector.shape_cast %0 : vector<1x8x16xf32> to vector<8x16xf32>
    %2 = arith.truncf %1 : vector<8x16xf32> to vector<8x16xbf16>
    %c0_2 = arith.constant 0 : index
    %c0_3 = arith.constant 0 : index
    %3 = vector.load %arg3[%c0_2, %c0_3] : memref<16x128xbf16, #tpu.memory_space<vmem>>, vector<16x128xbf16>
    %cst = arith.constant dense<0.000000e+00> : vector<8x128xf32>
    %4 = tpu.matmul %2, %3, %cst {dimension_numbers = #tpu.dot_dimension_numbers<[1], [0], [0], [1], [0, 0, 1, 1], [], []>} : vector<8x16xbf16>, vector<16x128xbf16>, vector<8x128xf32> -> vector<8x128xf32>
    %5 = arith.truncf %4 : vector<8x128xf32> to vector<8x128xbf16>
    %c0_4 = arith.constant 0 : index
    %c0_5 = arith.constant 0 : index
    %c0_6 = arith.constant 0 : index
    %6 = vector.load %arg4[%c0_4, %c0_5, %c0_6] : memref<1x8x128xbf16, #tpu.memory_space<vmem>>, vector<1x8x128xbf16>
    %7 = vector.shape_cast %6 : vector<1x8x128xbf16> to vector<8x128xbf16>
    %8 = vector.shape_cast %5 : vector<8x128xbf16> to vector<1x8x128xbf16>
    tpu.vector_store %arg4[%c0_4, %c0_5, %c0_6], %8 {strides = array<i32>} : memref<1x8x128xbf16, #tpu.memory_space<vmem>>, vector<1x8x128xbf16>,
    return
  }
  func.func @transform_0(%arg0: i32, %arg1: i32) -> (i32, i32, i32) {
    %c0_i32 = arith.constant 0 : i32
    %c0_i32_0 = arith.constant 0 : i32
    return %arg0, %arg1, %c0_i32 : i32, i32, i32
  }
  func.func @transform_1(%arg0: i32, %arg1: i32) -> (i32, i32) {
    %c0_i32 = arith.constant 0 : i32
    %c0_i32_0 = arith.constant 0 : i32
    %c0_i32_1 = arith.constant 0 : i32
    return %c0_i32, %c0_i32_0 : i32, i32
  }
  func.func @transform_2(%arg0: i32, %arg1: i32) -> (i32, i32, i32) {
    %c0_i32 = arith.constant 0 : i32
    %c0_i32_0 = arith.constant 0 : i32
    return %arg0, %arg1, %c0_i32 : i32, i32, i32
  }
}

</mosaic_0001>

<llo_original>
// kernel: tpu_custom_call.1
$region0: #{tpu_custom_call.1}
  #allocation0 [shape = 'u32[]', space=smem, size = 0x4, offset = 0x4, fixed_abs, tag = 'smem constant byte address 0x4 - core index']
  #allocation1 [shape = 'u32[144,128]{1,0:T(1,128)}', space=vmem, size = 0x12000, scoped, tag = 'internal scratch']
  %s0 = inlined_call_operand.hbm [shape: f32[1,8,16], index: 0, kind: input, shape index: {}]
  %s1 = inlined_call_operand.hbm [shape: bf16[16,128], index: 1, kind: input, shape index: {}]
  %s2 = inlined_call_operand.hbm [shape: bf16[1,8,128], index: 2, kind: output, shape index: {}]
  %s3 = sld [smem:[#allocation0]]
  $region26: #{tpu_custom_call.1} parent=0
    _
  %s5 = ssub.s32 1, %s3
  %s6 = scalar_select 0, %s5, %s3
  $region1: #{tpu_custom_call.1} parent=0
    #allocation2 [shape = 'u8[4096]{0}', space=vmem, size = 0x1000, scoped, tag = 'input window, operand 0, single buffered']
    #allocation3 [shape = 's32[1]{0}', space=sflag, size = 0x4, scoped, tag = 'scoped memory for tpu_custom_call.1']
    #allocation4 [shape = 's32[1]{0}', space=sflag, size = 0x4, scoped, tag = 'scoped memory for tpu_custom_call.1']
    #allocation5 [shape = 'u8[4096]{0}', space=vmem, size = 0x1000, scoped, tag = 'input window, operand 1, single buffered']
    #allocation6 [shape = 's32[1]{0}', space=sflag, size = 0x4, scoped, tag = 'scoped memory for tpu_custom_call.1']
    #allocation7 [shape = 'u8[2048]{0}', space=vmem, size = 0x800, scoped, tag = 'output window, operand 0, single buffered']
    %7 = vsyncpa [#allocation3], 0
    %8 = vsyncpa [#allocation6], 0
    %9 = vsyncpa [#allocation4], 0
    // Predicated region
    $region2: #{tpu_custom_call.1} parent=1 // pred_check
      _
    $region3: #{tpu_custom_call.1} parent=1 // pred_check_branch
      %11 = sbr.rel (0) target = $region5
    $region4: #{tpu_custom_call.1} parent=1 // pred_region
      %s13 = ssub.s32 128, 128
      %14 = vsyncadd [#allocation3], %s13
      %s16 = sshll.u32 [#allocation2], 4
      %s17 = int_to_ptr.vmem [resolvable:$true] %s16
      %19 = dma.hbm_to_vmem [thread:$0]  %s0, 128, %s17, [#allocation3]
    $region5: #{tpu_custom_call.1} parent=1 // pred_fallthru
      _
    // Predicated region
    $region6: #{tpu_custom_call.1} parent=1 // pred_check
      _
    $region7: #{tpu_custom_call.1} parent=1 // pred_check_branch
      %21 = sbr.rel (0) target = $region9
    $region8: #{tpu_custom_call.1} parent=1 // pred_region
      %s23 = ssub.s32 128, 128
      %24 = vsyncadd [#allocation6], %s23
      %s25 = sshll.u32 [#allocation5], 4
      %s26 = int_to_ptr.vmem [resolvable:$true] %s25
      %31 = dma.hbm_to_vmem [thread:$0]  %s1, 128, %s26, [#allocation6], 64, 64, 4
    $region9: #{tpu_custom_call.1} parent=1 // pred_fallthru
      _
    // Predicated region
    $region10: #{tpu_custom_call.1} parent=1 // pred_check
      _
    $region11: #{tpu_custom_call.1} parent=1 // pred_check_branch
      %33 = sbr.rel (0) target = $region13
    $region12: #{tpu_custom_call.1} parent=1 // pred_region
      %34 = dma.done [#allocation3], 128
    $region13: #{tpu_custom_call.1} parent=1 // pred_fallthru
      _
    // Predicated region
    $region14: #{tpu_custom_call.1} parent=1 // pred_check
      _
    $region15: #{tpu_custom_call.1} parent=1 // pred_check_branch
      %36 = sbr.rel (0) target = $region17
    $region16: #{tpu_custom_call.1} parent=1 // pred_region
      %37 = dma.done [#allocation6], 128
    $region17: #{tpu_custom_call.1} parent=1 // pred_fallthru
      _
    %v39 = vld [vmem:[#allocation2] sm:$0xff]
    %v40 = vpack.c.bf16 %v39, %v39
    %v41 = vld [vmem:[#allocation5] sm:$0xf]
    %v42 = vld [vmem:[#allocation5 + $0x4] sm:$0xf]
    %v45 = vunpack.c.l.b16 %v41
    %v46 = vunpack.c.l.b16 %v42
    %v47 = vpack.c.b16 %v46, %v45
    %vm49 = vcmask 130048
    %v51 = vsel %vm49, %v40, 0
    %53 = vmatprep.subr.bf16.mxu0 0
    %54 = vmatpush1.bf16.msra.mxu0 %v47
    %55 = vmatprep.subr.bf16.mxu0 0
    %56 = vmatpush1.bf16.msra.mxu0 0
    %57 = vmatprep.subr.bf16.mxu0 0
    %58 = vmatpush1.bf16.msra.mxu0 0
    %59 = vmatprep.subr.bf16.mxu0 0
    %60 = vmatpush1.bf16.msra.mxu0 0
    %61 = vmatprep.subr.bf16.mxu0 0
    %62 = vmatpush1.bf16.msra.mxu0 0
    %63 = vmatprep.subr.bf16.mxu0 0
    %64 = vmatpush1.bf16.msra.mxu0 0
    %65 = vmatprep.subr.bf16.mxu0 0
    %66 = vmatpush1.bf16.msra.mxu0 0
    %67 = vmatprep.subr.bf16.mxu0 0
    %68 = vmatpush1.bf16.msra.mxu0 0
    %69 = vmatprep.subr.bf16.mxu0 0
    %70 = vmatpush1.bf16.msra.mxu0 0
    %71 = vmatprep.subr.bf16.mxu0 0
    %72 = vmatpush1.bf16.msra.mxu0 0
    %73 = vmatprep.subr.bf16.mxu0 0
    %74 = vmatpush1.bf16.msra.mxu0 0
    %75 = vmatprep.subr.bf16.mxu0 0
    %76 = vmatpush1.bf16.msra.mxu0 0
    %77 = vmatprep.subr.bf16.mxu0 0
    %78 = vmatpush1.bf16.msra.mxu0 0
    %79 = vmatprep.subr.bf16.mxu0 0
    %80 = vmatpush1.bf16.msra.mxu0 0
    %81 = vmatprep.subr.bf16.mxu0 0
    %82 = vmatpush1.bf16.msra.mxu0 0
    %83 = vmatprep.subr.bf16.mxu0 0
    %84 = vmatpush1.bf16.msra.mxu0 0
    %85 = vmatprep.mubr.bf16.mxu0 0
    %86 = vmatmul.mubr.bf16.gmra.mrb[0].mxu0 %v51
    %v87 = vpop.f32.mrb[0].mxu0
    %v88 = vadd.f32 0.0, %v87
    %v89 = vpop.f32.mrb[0].mxu0
    %v90 = vpop.f32.mrb[0].mxu0
    %v91 = vpop.f32.mrb[0].mxu0
    %92 = vdwg.mxu0
    %v93 = vpack.c.bf16 %v88, %v88
    %94 = vst [vmem:[#allocation7] sm:$0xf] %v93
    // Predicated region
    $region18: #{tpu_custom_call.1} parent=1 // pred_check
      _
    $region19: #{tpu_custom_call.1} parent=1 // pred_check_branch
      %96 = sbr.rel (0) target = $region21
    $region20: #{tpu_custom_call.1} parent=1 // pred_region
      %s98 = ssub.s32 64, 64
      %99 = vsyncadd [#allocation4], %s98
      %s101 = sshll.u32 [#allocation7], 4
      %s102 = int_to_ptr.vmem [resolvable:$true] %s101
      %104 = dma.vmem_to_hbm [thread:$0]  %s102, 64, %s2, [#allocation4]
    $region21: #{tpu_custom_call.1} parent=1 // pred_fallthru
      _
    // Predicated region
    $region22: #{tpu_custom_call.1} parent=1 // pred_check
      _
    $region23: #{tpu_custom_call.1} parent=1 // pred_check_branch
      %106 = sbr.rel (0) target = $region25
    $region24: #{tpu_custom_call.1} parent=1 // pred_region
      %107 = dma.done [#allocation4], 64
    $region25: #{tpu_custom_call.1} parent=1 // pred_fallthru
      _
    %108 = vsyncpa [#allocation3], 1
    %109 = vsyncpa [#allocation6], 1
    %110 = vsyncpa [#allocation4], 1

</llo_original>
